<compile_context>
chip_gen: v7x
topology: tpu7x:2x2x1
jax: 0.10.0
libtpu: 0.0.40
codegen_flags: <defaults>
</compile_context>

<pallas_src>
import jax
import jax.numpy as jnp
from jax import lax
from jax.experimental import pallas as pl
from jax.experimental.pallas import tpu as pltpu


_LANE = 128
_DEFAULT_TILE_E = 32768            # large, 128-aligned edge tile (overhead-amortizing)
_VMEM_BUDGET = 28 * 1024 * 1024    # conservative across v5e/v6e (128 MiB) and v7x (64 MiB)
_VMEM_LIMIT = 32 << 20             # budget + headroom; well under v7x physical VMEM
_FUSE_MAX_NODES = 1024             # one-hot gather footprint scales with num_nodes


def _round_up(x, m):
    return ((x + m - 1) // m) * m


def _choose_tile(num_edges, tile_e, bytes_per_lane):
    """Lane-aligned edge tile capped by a VMEM budget and by a >=2-step grid."""
    cap = (_VMEM_BUDGET // max(int(bytes_per_lane), 1)) // _LANE * _LANE
    cap = max(cap, _LANE)
    tile = min(int(tile_e), cap)
    # Do not over-tile tiny problems.
    tile = min(tile, _round_up(max(num_edges, 1), _LANE))
    # Keep at least 2 grid steps when possible so both v7x TensorCores get work.
    if num_edges > _LANE:
        tile = min(tile, _round_up(pl.cdiv(num_edges, 2), _LANE))
    tile = _round_up(max(tile, _LANE), _LANE)
    n_tiles = pl.cdiv(num_edges, tile)
    return tile, n_tiles


# --------------------------------------------------------------------------- #
# Fused kernel: gather-as-one-hot-matmul + 2-layer MLP, all feature-major.     #
# --------------------------------------------------------------------------- #
def _fused_edge_mlp_kernel(idx_ref, attr_ref, a_src_ref, a_dst_ref,
                           w1a_ref, b1_ref, w2_ref, b2_ref, o_ref):
    # idx_ref : (2, T) int32        edge endpoints for this tile (streamed)
    # attr_ref: (A, T) f32          edge_attr, feature-major (streamed)
    # a_src_ref / a_dst_ref: (H, Np) f32   W1_srcT @ embT / W1_dstT @ embT (resident)
    # w1a_ref : (H, A) f32          edge-attr slice of W1T (resident)
    # b1_ref  : (H, 1), w2_ref: (1, H), b2_ref: (1, 1)
    # o_ref   : (1, T) f32          lane-dense output block
    n_pad = a_src_ref.shape[1]
    t = idx_ref.shape[1]
    idx = idx_ref[...]
    node_iota = lax.broadcasted_iota(jnp.int32, (n_pad, t), 0)
    # One-hot gather: no memory indexing -> no OOB risk even for padded lanes.
    oh_src = (node_iota == idx[0:1, :]).astype(jnp.float32)   # (Np, T), exact 0/1
    oh_dst = (node_iota == idx[1:2, :]).astype(jnp.float32)
    h = jnp.dot(a_src_ref[...], oh_src, preferred_element_type=jnp.float32)
    h = h + jnp.dot(a_dst_ref[...], oh_dst, preferred_element_type=jnp.float32)
    h = h + jnp.dot(w1a_ref[...], attr_ref[...], preferred_element_type=jnp.float32)
    h = jnp.tanh(h + b1_ref[...])                                            # (H, T)
    y = jnp.dot(w2_ref[...], h, preferred_element_type=jnp.float32) + b2_ref[...]
    o_ref[...] = jax.nn.sigmoid(y)                                           # (1, T)


def edge_mlp_fused(embeddings, edge_index, edge_attr, w1, b1, w2, b2,
                   *, tile_e=_DEFAULT_TILE_E):
    """Fused gather + MLP. Returns (1, E) f32 (lane-dense)."""
    num_nodes, emb_dim = embeddings.shape
    num_edges, attr_dim = edge_attr.shape
    d, hidden = w1.shape
    assert d == 2 * emb_dim + attr_dim

    n_pad = _round_up(max(num_nodes, 1), 8)     # sublane-align the one-hot/contract dim

    # Precompute the tiny resident operands (fp32, exact w.r.t. reassociation
    # up to ~1e-7; one-hot selection itself is exact).
    w1f = w1.astype(jnp.float32)
    embf = embeddings.astype(jnp.float32)
    a_src = (embf @ w1f[:emb_dim]).T                       # (H, N)
    a_dst = (embf @ w1f[emb_dim:2 * emb_dim]).T            # (H, N)
    if n_pad != num_nodes:
        pad = ((0, 0), (0, n_pad - num_nodes))
        a_src = jnp.pad(a_src, pad)
        a_dst = jnp.pad(a_dst, pad)
    w1_attr_t = w1f[2 * emb_dim:].T                        # (H, A)
    b1_c = b1.reshape(hidden, 1).astype(jnp.float32)
    w2_t = w2.T.astype(jnp.float32)                        # (1, H)
    b2_c = b2.reshape(1, 1).astype(jnp.float32)

    # Approx VMEM bytes per edge-lane: idx + attr + out blocks (double-buffered,
    # sublane-padded) + two f32 one-hots + int32 iota + f32 intermediates.
    bytes_per_lane = 2 * 2 * 4 + 2 * 8 * 4 + 2 * 8 * 4 + 2 * n_pad * 4 + n_pad * 4 + 2 * 8 * 4
    tile, n_tiles = _choose_tile(num_edges, tile_e, bytes_per_lane)
    e_pad = n_tiles * tile

    idx = edge_index.astype(jnp.int32)
    attr_t = edge_attr.astype(jnp.float32).T               # (A, E)
    if e_pad != num_edges:
        # Tail lanes: index 0 (valid) / zero attrs; results are finite and sliced off.
        idx = jnp.pad(idx, ((0, 0), (0, e_pad - num_edges)))
        attr_t = jnp.pad(attr_t, ((0, 0), (0, e_pad - num_edges)))

    out = pl.pallas_call(
        _fused_edge_mlp_kernel,
        out_shape=jax.ShapeDtypeStruct((1, e_pad), jnp.float32),
        grid_spec=pltpu.PrefetchScalarGridSpec(
            num_scalar_prefetch=0,
            grid=(n_tiles,),
            in_specs=[
                pl.BlockSpec((2, tile), lambda i: (0, i)),           # edge_index tile
                pl.BlockSpec((attr_dim, tile), lambda i: (0, i)),    # edge_attr tile
                pl.BlockSpec((hidden, n_pad), lambda i: (0, 0)),     # A_src (resident)
                pl.BlockSpec((hidden, n_pad), lambda i: (0, 0)),     # A_dst (resident)
                pl.BlockSpec((hidden, attr_dim), lambda i: (0, 0)),  # W1_attrT
                pl.BlockSpec((hidden, 1), lambda i: (0, 0)),         # b1
                pl.BlockSpec((1, hidden), lambda i: (0, 0)),         # W2T
                pl.BlockSpec((1, 1), lambda i: (0, 0)),              # b2
            ],
            out_specs=pl.BlockSpec((1, tile), lambda i: (0, i)),     # lane-dense out
        ),
        compiler_params=pltpu.CompilerParams(
            dimension_semantics=("parallel",),
            vmem_limit_bytes=_VMEM_LIMIT,
        ),
    )(idx, attr_t, a_src, a_dst, w1_attr_t, b1_c, w2_t, b2_c)
    return out[:, :num_edges]


# --------------------------------------------------------------------------- #
# Fallback kernel: x_t (D, E) built in JAX, streamed feature-major.            #
# --------------------------------------------------------------------------- #
def _xmajor_edge_mlp_kernel(x_ref, w1_ref, b1_ref, w2_ref, b2_ref, o_ref):
    h = jnp.dot(w1_ref[...], x_ref[...], preferred_element_type=jnp.float32)
    h = jnp.tanh(h + b1_ref[...])
    y = jnp.dot(w2_ref[...], h, preferred_element_type=jnp.float32) + b2_ref[...]
    o_ref[...] = jax.nn.sigmoid(y)


def edge_mlp_xmajor(x_t, w1, b1, w2, b2, *, tile_e=_DEFAULT_TILE_E):
    d, num_edges = x_t.shape
    hidden = w1.shape[1]
    bytes_per_lane = 2 * _round_up(d, 8) * 4 + 2 * 8 * 4 + 2 * 8 * 4
    tile, n_tiles = _choose_tile(num_edges, tile_e, bytes_per_lane)
    e_pad = n_tiles * tile
    if e_pad != num_edges:
        x_t = jnp.pad(x_t, ((0, 0), (0, e_pad - num_edges)))

    w1_t = w1.T.astype(jnp.float32)
    b1_c = b1.reshape(hidden, 1).astype(jnp.float32)
    w2_t = w2.T.astype(jnp.float32)
    b2_c = b2.reshape(1, 1).astype(jnp.float32)

    out = pl.pallas_call(
        _xmajor_edge_mlp_kernel,
        out_shape=jax.ShapeDtypeStruct((1, e_pad), jnp.float32),
        grid_spec=pltpu.PrefetchScalarGridSpec(
            num_scalar_prefetch=0,
            grid=(n_tiles,),
            in_specs=[
                pl.BlockSpec((d, tile), lambda i: (0, i)),
                pl.BlockSpec((hidden, d), lambda i: (0, 0)),
                pl.BlockSpec((hidden, 1), lambda i: (0, 0)),
                pl.BlockSpec((1, hidden), lambda i: (0, 0)),
                pl.BlockSpec((1, 1), lambda i: (0, 0)),
            ],
            out_specs=pl.BlockSpec((1, tile), lambda i: (0, i)),
        ),
        compiler_params=pltpu.CompilerParams(
            dimension_semantics=("parallel",),
            vmem_limit_bytes=_VMEM_LIMIT,
        ),
    )(x_t, w1_t, b1_c, w2_t, b2_c)
    return out[:, :num_edges]


# --------------------------------------------------------------------------- #
# Module-level forward.                                                        #
# --------------------------------------------------------------------------- #
def edge_dense_classifier_edge_attribute(embeddings, edge_index, edge_attr,
                                         w1, b1, w2, b2, *,
                                         tile_e=_DEFAULT_TILE_E, fuse_gather=None):
    """Forward pass matching the PyTorch module; returns (E, 1)."""
    num_nodes = embeddings.shape[0]
    if fuse_gather is None:
        fuse_gather = num_nodes <= _FUSE_MAX_NODES
    if fuse_gather:
        out_t = edge_mlp_fused(embeddings, edge_index, edge_attr,
                               w1, b1, w2, b2, tile_e=tile_e)
    else:
        # Large node count: JAX-side feature-major gather/concat, Pallas MLP.
        emb_t = embeddings.astype(jnp.float32).T
        src_t = emb_t[:, edge_index[0]]
        dst_t = emb_t[:, edge_index[1]]
        x_t = jnp.concatenate(
            [src_t, dst_t, edge_attr.astype(jnp.float32).T], axis=0)
        out_t = edge_mlp_xmajor(x_t, w1, b1, w2, b2, tile_e=tile_e)
    # Torch parity: (E, 1).  (Callers wanting a lane-dense result can use the
    # (1, E) output of edge_mlp_* directly and skip this transpose.)
    return out_t.T


def _init_params(key, input_dim, hidden=8):
    # Deterministic synthetic init (roughly torch's Linear default scale).
    k1, k2, k3, k4 = jax.random.split(key, 4)
    lim1 = 1.0 / jnp.sqrt(input_dim)
    lim2 = 1.0 / jnp.sqrt(hidden)
    w1 = jax.random.uniform(k1, (input_dim, hidden), jnp.float32, -lim1, lim1)
    b1 = jax.random.uniform(k2, (hidden,), jnp.float32, -lim1, lim1)
    w2 = jax.random.uniform(k3, (hidden, 1), jnp.float32, -lim2, lim2)
    b2 = jax.random.uniform(k4, (1,), jnp.float32, -lim2, lim2)
    return w1, b1, w2, b2


if __name__ == "__main__":
    key = jax.random.PRNGKey(0)
    k_emb, k_attr, k_idx, k_par = jax.random.split(key, 4)

    num_nodes = 32
    emb_dim = 4
    edge_attr_dim = 2
    input_dim = 2 * emb_dim + edge_attr_dim   # = 10 (module default)
    num_edges = 1000                          # forces multi-tile + padded-tail path

    embeddings = jax.random.normal(k_emb, (num_nodes, emb_dim), jnp.float32)
    edge_attr = jax.random.normal(k_attr, (num_edges, edge_attr_dim), jnp.float32)
    edge_index = jax.random.randint(k_idx, (2, num_edges), 0, num_nodes, jnp.int32)

    w1, b1, w2, b2 = _init_params(k_par, input_dim)

    # Pure-JAX reference of the same math.
    x_ref = jnp.concatenate(
        [embeddings[edge_index[0]], embeddings[edge_index[1]], edge_attr], axis=1)
    ref = jax.nn.sigmoid(jnp.tanh(x_ref @ w1 + b1) @ w2 + b2)

    # Fused gather path (default for small node counts).
    out_fused = jax.block_until_ready(edge_dense_classifier_edge_attribute(
        embeddings, edge_index, edge_attr, w1, b1, w2, b2, fuse_gather=True))
    # Fallback x-major path (used for large node counts) also exercised.
    out_xmajor = jax.block_until_ready(edge_dense_classifier_edge_attribute(
        embeddings, edge_index, edge_attr, w1, b1, w2, b2, fuse_gather=False))

    assert out_fused.shape == (num_edges, 1)
    assert out_xmajor.shape == (num_edges, 1)
    assert jnp.max(jnp.abs(out_fused - ref)) < 1e-5
    assert jnp.max(jnp.abs(out_xmajor - ref)) < 1e-5

    print("KERNEL_OK")
</pallas_src>

<mosaic_0001>
module attributes {stable_mosaic.version = 11 : i64} {
  func.func @_fused_edge_mlp_kernel(%arg0: i32, %arg1: memref<2x512xi32, #tpu.memory_space<vmem>>, %arg2: memref<2x512xf32, #tpu.memory_space<vmem>>, %arg3: memref<8x32xf32, #tpu.memory_space<vmem>>, %arg4: memref<8x32xf32, #tpu.memory_space<vmem>>, %arg5: memref<8x2xf32, #tpu.memory_space<vmem>>, %arg6: memref<8x1xf32, #tpu.memory_space<vmem>>, %arg7: memref<1x8xf32, #tpu.memory_space<vmem>>, %arg8: memref<1x1xf32, #tpu.memory_space<vmem>>, %arg9: memref<1x512xf32, #tpu.memory_space<vmem>>) attributes {dimension_semantics = [#tpu.dimension_semantics<parallel>], iteration_bounds = array<i64: 2>, scalar_prefetch = 0 : i64, scratch_operands = 0 : i64, tpu.core_type = #tpu.core_type<tc>, window_params = [{transform_indices = @transform_0, window_bounds = array<i64: 2, 512>}, {transform_indices = @transform_1, window_bounds = array<i64: 2, 512>}, {pipeline_mode = #tpu.pipeline_mode<synchronous>, transform_indices = @transform_2, window_bounds = array<i64: 8, 32>}, {pipeline_mode = #tpu.pipeline_mode<synchronous>, transform_indices = @transform_3, window_bounds = array<i64: 8, 32>}, {pipeline_mode = #tpu.pipeline_mode<synchronous>, transform_indices = @transform_4, window_bounds = array<i64: 8, 2>}, {pipeline_mode = #tpu.pipeline_mode<synchronous>, transform_indices = @transform_5, window_bounds = array<i64: 8, 1>}, {pipeline_mode = #tpu.pipeline_mode<synchronous>, transform_indices = @transform_6, window_bounds = array<i64: 1, 8>}, {pipeline_mode = #tpu.pipeline_mode<synchronous>, transform_indices = @transform_7, window_bounds = array<i64: 1, 1>}, {transform_indices = @transform_8, window_bounds = array<i64: 1, 512>}]} {
    %c0 = arith.constant 0 : index
    %c0_0 = arith.constant 0 : index
    %0 = vector.load %arg1[%c0, %c0_0] : memref<2x512xi32, #tpu.memory_space<vmem>>, vector<2x512xi32>
    %1 = tpu.iota {dimensions = array<i32: 0>} : vector<32x512xi32>
    %2 = vector.extract_strided_slice %0 {offsets = [0, 0], sizes = [1, 512], strides = [1, 1]} : vector<2x512xi32> to vector<1x512xi32>
    %3 = vector.broadcast %2 : vector<1x512xi32> to vector<32x512xi32>
    %4 = arith.cmpi eq, %1, %3 : vector<32x512xi32>
    %5 = arith.extui %4 : vector<32x512xi1> to vector<32x512xi32>
    %6 = arith.sitofp %5 : vector<32x512xi32> to vector<32x512xf32>
    %7 = vector.extract_strided_slice %0 {offsets = [1, 0], sizes = [1, 512], strides = [1, 1]} : vector<2x512xi32> to vector<1x512xi32>
    %8 = vector.broadcast %7 : vector<1x512xi32> to vector<32x512xi32>
    %9 = arith.cmpi eq, %1, %8 : vector<32x512xi32>
    %10 = arith.extui %9 : vector<32x512xi1> to vector<32x512xi32>
    %11 = arith.sitofp %10 : vector<32x512xi32> to vector<32x512xf32>
    %c0_1 = arith.constant 0 : index
    %c0_2 = arith.constant 0 : index
    %12 = vector.load %arg3[%c0_1, %c0_2] : memref<8x32xf32, #tpu.memory_space<vmem>>, vector<8x32xf32>
    %cst = arith.constant dense<0.000000e+00> : vector<8x512xf32>
    %13 = tpu.matmul %12, %6, %cst {dimension_numbers = #tpu.dot_dimension_numbers<[1], [0], [0], [1], [0, 0, 1, 1], [], []>} : vector<8x32xf32>, vector<32x512xf32>, vector<8x512xf32> -> vector<8x512xf32>
    %c0_3 = arith.constant 0 : index
    %c0_4 = arith.constant 0 : index
    %14 = vector.load %arg4[%c0_3, %c0_4] : memref<8x32xf32, #tpu.memory_space<vmem>>, vector<8x32xf32>
    %cst_5 = arith.constant dense<0.000000e+00> : vector<8x512xf32>
    %15 = tpu.matmul %14, %11, %cst_5 {dimension_numbers = #tpu.dot_dimension_numbers<[1], [0], [0], [1], [0, 0, 1, 1], [], []>} : vector<8x32xf32>, vector<32x512xf32>, vector<8x512xf32> -> vector<8x512xf32>
    %16 = arith.addf %13, %15 : vector<8x512xf32>
    %c0_6 = arith.constant 0 : index
    %c0_7 = arith.constant 0 : index
    %17 = vector.load %arg5[%c0_6, %c0_7] : memref<8x2xf32, #tpu.memory_space<vmem>>, vector<8x2xf32>
    %c0_8 = arith.constant 0 : index
    %c0_9 = arith.constant 0 : index
    %18 = vector.load %arg2[%c0_8, %c0_9] : memref<2x512xf32, #tpu.memory_space<vmem>>, vector<2x512xf32>
    %cst_10 = arith.constant dense<0.000000e+00> : vector<8x512xf32>
    %19 = tpu.matmul %17, %18, %cst_10 {dimension_numbers = #tpu.dot_dimension_numbers<[1], [0], [0], [1], [0, 0, 1, 1], [], []>} : vector<8x2xf32>, vector<2x512xf32>, vector<8x512xf32> -> vector<8x512xf32>
    %20 = arith.addf %16, %19 : vector<8x512xf32>
    %c0_11 = arith.constant 0 : index
    %c0_12 = arith.constant 0 : index
    %21 = vector.load %arg6[%c0_11, %c0_12] : memref<8x1xf32, #tpu.memory_space<vmem>>, vector<8x1xf32>
    %22 = vector.broadcast %21 : vector<8x1xf32> to vector<8x512xf32>
    %23 = arith.addf %20, %22 : vector<8x512xf32>
    %24 = math.tanh %23 : vector<8x512xf32>
    %c0_13 = arith.constant 0 : index
    %c0_14 = arith.constant 0 : index
    %25 = vector.load %arg7[%c0_13, %c0_14] : memref<1x8xf32, #tpu.memory_space<vmem>>, vector<1x8xf32>
    %cst_15 = arith.constant dense<0.000000e+00> : vector<1x512xf32>
    %26 = tpu.matmul %25, %24, %cst_15 {dimension_numbers = #tpu.dot_dimension_numbers<[1], [0], [0], [1], [0, 0, 1, 1], [], []>} : vector<1x8xf32>, vector<8x512xf32>, vector<1x512xf32> -> vector<1x512xf32>
    %c0_16 = arith.constant 0 : index
    %c0_17 = arith.constant 0 : index
    %27 = vector.load %arg8[%c0_16, %c0_17] : memref<1x1xf32, #tpu.memory_space<vmem>>, vector<1x1xf32>
    %28 = vector.broadcast %27 : vector<1x1xf32> to vector<1x512xf32>
    %29 = arith.addf %26, %28 : vector<1x512xf32>
    %30 = arith.negf %29 : vector<1x512xf32>
    %31 = math.exp %30 : vector<1x512xf32>
    %cst_18 = arith.constant 1.000000e+00 : f32
    %32 = vector.broadcast %cst_18 : f32 to vector<1x512xf32>
    %33 = arith.addf %32, %31 : vector<1x512xf32>
    %34 = arith.divf %32, %33 : vector<1x512xf32>
    %c0_19 = arith.constant 0 : index
    %c0_20 = arith.constant 0 : index
    %35 = vector.load %arg9[%c0_19, %c0_20] : memref<1x512xf32, #tpu.memory_space<vmem>>, vector<1x512xf32>
    tpu.vector_store %arg9[%c0_19, %c0_20], %34 {strides = array<i32>} : memref<1x512xf32, #tpu.memory_space<vmem>>, vector<1x512xf32>,
    return
  }
  func.func @transform_0(%arg0: i32) -> (i32, i32) {
    %c0_i32 = arith.constant 0 : i32
    %c0_i32_0 = arith.constant 0 : i32
    return %c0_i32, %arg0 : i32, i32
  }
  func.func @transform_1(%arg0: i32) -> (i32, i32) {
    %c0_i32 = arith.constant 0 : i32
    %c0_i32_0 = arith.constant 0 : i32
    return %c0_i32, %arg0 : i32, i32
  }
  func.func @transform_2(%arg0: i32) -> (i32, i32) {
    %c0_i32 = arith.constant 0 : i32
    %c0_i32_0 = arith.constant 0 : i32
    %c0_i32_1 = arith.constant 0 : i32
    return %c0_i32, %c0_i32_0 : i32, i32
  }
  func.func @transform_3(%arg0: i32) -> (i32, i32) {
    %c0_i32 = arith.constant 0 : i32
    %c0_i32_0 = arith.constant 0 : i32
    %c0_i32_1 = arith.constant 0 : i32
    return %c0_i32, %c0_i32_0 : i32, i32
  }
  func.func @transform_4(%arg0: i32) -> (i32, i32) {
    %c0_i32 = arith.constant 0 : i32
    %c0_i32_0 = arith.constant 0 : i32
    %c0_i32_1 = arith.constant 0 : i32
    return %c0_i32, %c0_i32_0 : i32, i32
  }
  func.func @transform_5(%arg0: i32) -> (i32, i32) {
    %c0_i32 = arith.constant 0 : i32
    %c0_i32_0 = arith.constant 0 : i32
    %c0_i32_1 = arith.constant 0 : i32
    return %c0_i32, %c0_i32_0 : i32, i32
  }
  func.func @transform_6(%arg0: i32) -> (i32, i32) {
    %c0_i32 = arith.constant 0 : i32
    %c0_i32_0 = arith.constant 0 : i32
    %c0_i32_1 = arith.constant 0 : i32
    return %c0_i32, %c0_i32_0 : i32, i32
  }
  func.func @transform_7(%arg0: i32) -> (i32, i32) {
    %c0_i32 = arith.constant 0 : i32
    %c0_i32_0 = arith.constant 0 : i32
    %c0_i32_1 = arith.constant 0 : i32
    return %c0_i32, %c0_i32_0 : i32, i32
  }
  func.func @transform_8(%arg0: i32) -> (i32, i32) {
    %c0_i32 = arith.constant 0 : i32
    %c0_i32_0 = arith.constant 0 : i32
    return %c0_i32, %arg0 : i32, i32
  }
}

</mosaic_0001>

<llo_original>
// kernel: tpu_custom_call.1
$region0: #{tpu_custom_call.1}
  #allocation0 [shape = 'u32[]', space=smem, size = 0x4, offset = 0x4, fixed_abs, tag = 'smem constant byte address 0x4 - core index']
  #allocation1 [shape = 'u32[144,128]{1,0:T(1,128)}', space=vmem, size = 0x12000, scoped, tag = 'internal scratch']
  #allocation2 [shape = 'f32[1,1]{1,0:T(1,128)S(1)}', space=vmem, size = 0x200, scoped, tag = 'scoped memory for tpu_custom_call.1']
  %s0 = inlined_call_operand.vmem [shape: s32[2,1024], index: 0, kind: input, shape index: {}]
  %s1 = inlined_call_operand.hbm [shape: f32[2,1024], index: 1, kind: input, shape index: {}]
  %s2 = inlined_call_operand.vmem [shape: f32[8,32], index: 2, kind: input, shape index: {}]
  %s3 = inlined_call_operand.vmem [shape: f32[8,32], index: 3, kind: input, shape index: {}]
  %s4 = inlined_call_operand.vmem [shape: f32[8,2], index: 4, kind: input, shape index: {}]
  %s5 = inlined_call_operand.vmem [shape: f32[8,1], index: 5, kind: input, shape index: {}]
  %s6 = inlined_call_operand.vmem [shape: f32[1,8], index: 6, kind: input, shape index: {}]
  %s7 = inlined_call_operand.<no memory space> [shape: f32[1,1], index: 7, kind: input, shape index: {}]
  %s8 = inlined_call_operand.hbm [shape: f32[1,1024], index: 8, kind: output, shape index: {}]
  %s9 = sld [smem:[#allocation0]]
  $region69: #{tpu_custom_call.1} parent=0
    _
  %s11 = ssub.s32 1, %s9
  %s12 = scalar_select 0, %s11, %s9
  %v13 = vstv %s7
  %14 = vst [vmem:[#allocation2] sm:$0x1] %v13
  $region1: #{tpu_custom_call.1} parent=0
    #allocation3 [shape = 'u8[8192]{0}', space=vmem, size = 0x2000, scoped, tag = 'input window, operand 1']
    #allocation4 [shape = 's32[2]{0}', space=sflag, size = 0x8, scoped, tag = 'scoped memory for tpu_custom_call.1']
    #allocation5 [shape = 's32[2]{0}', space=sflag, size = 0x8, scoped, tag = 'scoped memory for tpu_custom_call.1']
    #allocation6 [shape = 'u8[4096]{0}', space=vmem, size = 0x1000, scoped, tag = 'output window, operand 0']
    %15 = vsyncpa [#allocation4], 0
    %s16 = scalar_lea.sflag [#allocation4], 1
    %17 = vsyncpa %s16, 0
    %18 = vsyncpa [#allocation5], 0
    %s19 = scalar_lea.sflag [#allocation5], 1
    %20 = vsyncpa %s19, 0
    loop: start=0, step=1, limit=4
    $region2: #{tpu_custom_call.1} parent=1 // loop_pre_header
      _
    $region3: #{tpu_custom_call.1} parent=1 // loop_header
      %s22 = sphi 0, %s26
      %p23 = scmp.ge.s32.totalorder %s22, 4
      %s32 = sphi 0, %s34
      %s35 = sphi 0, %s32
      %s36 = sphi 0, %s35
      %s52 = sphi 0, %s36
      %s58 = sphi 0, %s60
      %s61 = sphi 0, %s58
      %s62 = sphi 0, %s61
      %s78 = sphi 0, %s62
      %s82 = sphi 0, %s82
      %s84 = sphi 0, %s82
      %s85 = sphi 0, %s84
      %s99 = sphi 0, %s85
      %s103 = sphi 0, %s103
      %s105 = sphi 0, %s103
      %s106 = sphi 0, %s105
      %s120 = sphi 0, %s106
      %s124 = sphi 0, %s124
      %s126 = sphi 0, %s124
      %s127 = sphi 0, %s126
      %s141 = sphi 0, %s127
      %s145 = sphi 0, %s145
      %s147 = sphi 0, %s145
      %s148 = sphi 0, %s147
      %s162 = sphi 0, %s148
      %s166 = sphi 0, %s166
      %s168 = sphi 0, %s166
      %s169 = sphi 0, %s168
      %s183 = sphi 0, %s169
      %s187 = sphi 0, %s187
      %s189 = sphi 0, %s187
      %s190 = sphi 0, %s189
      %s204 = sphi 0, %s190
      %s210 = sphi 0, %s212
      %s213 = sphi 0, %s210
      %s214 = sphi 0, %s213
      %s230 = sphi 0, %s214
    $region4: #{tpu_custom_call.1} parent=1 // loop_header_branch
      %25 = sbr.rel (%p23) target = $region8
    $region5: #{tpu_custom_call.1} parent=1 // loop_body
      %s27 = ssub.s32 %s22, 1
      %s28 = ssub.s32 %s22, 2
      %s29 = sadd.s32 %s22, 1
      %s30 = ssub.s32 %s22, %s29
      %p31 = scmp.eq.s32.totalorder %s30, 0
      %s33 = sadd.s32 %s32, 1
      %s34 = scalar_select %p31, %s32, %s33
      %p37 = pneg %p31
      %p38 = scmp.eq.s32.totalorder %s22, 1
      %p39 = por %p37, %p38
      %p40 = scmp.ne.s32.totalorder %s32, %s35
      %p41 = scmp.eq.s32.totalorder %s22, 0
      %p42 = por %p40, %p41
      %p43 = scmp.ne.s32.totalorder %s32, %s35
      %p44 = scmp.eq.s32.totalorder %s27, 1
      %p45 = por %p43, %p44
      %p46 = scmp.ne.s32.totalorder %s35, %s36
      %p47 = scmp.eq.s32.totalorder %s27, 0
      %p48 = por %p46, %p47
      %p49 = scmp.ne.s32.totalorder %s35, %s36
      %p50 = scmp.eq.s32.totalorder %s28, 1
      %p51 = por %p49, %p50
      %p53 = scmp.ne.s32.totalorder %s36, %s52
      %p54 = scmp.eq.s32.totalorder %s28, 0
      %p55 = por %p53, %p54
      %s56 = ssub.s32 %s22, %s29
      %p57 = scmp.eq.s32.totalorder %s56, 0
      %s59 = sadd.s32 %s58, 1
      %s60 = scalar_select %p57, %s58, %s59
      %p63 = pneg %p57
      %p64 = scmp.eq.s32.totalorder %s22, 1
      %p65 = por %p63, %p64
      %p66 = scmp.ne.s32.totalorder %s58, %s61
      %p67 = scmp.eq.s32.totalorder %s22, 0
      %p68 = por %p66, %p67
      %p69 = scmp.ne.s32.totalorder %s58, %s61
      %p70 = scmp.eq.s32.totalorder %s27, 1
      %p71 = por %p69, %p70
      %p72 = scmp.ne.s32.totalorder %s61, %s62
      %p73 = scmp.eq.s32.totalorder %s27, 0
      %p74 = por %p72, %p73
      %p75 = scmp.ne.s32.totalorder %s61, %s62
      %p76 = scmp.eq.s32.totalorder %s28, 1
      %p77 = por %p75, %p76
      %p79 = scmp.ne.s32.totalorder %s62, %s78
      %p80 = scmp.eq.s32.totalorder %s28, 0
      %p81 = por %p79, %p80
      %s83 = sadd.s32 %s82, 1
      %p86 = scmp.eq.s32.totalorder %s22, 1
      %p87 = scmp.ne.s32.totalorder %s82, %s84
      %p88 = scmp.eq.s32.totalorder %s22, 0
      %p89 = por %p87, %p88
      %p90 = scmp.ne.s32.totalorder %s82, %s84
      %p91 = scmp.eq.s32.totalorder %s27, 1
      %p92 = por %p90, %p91
      %p93 = scmp.ne.s32.totalorder %s84, %s85
      %p94 = scmp.eq.s32.totalorder %s27, 0
      %p95 = por %p93, %p94
      %p96 = scmp.ne.s32.totalorder %s84, %s85
      %p97 = scmp.eq.s32.totalorder %s28, 1
      %p98 = por %p96, %p97
      %p100 = scmp.ne.s32.totalorder %s85, %s99
      %p101 = scmp.eq.s32.totalorder %s28, 0
      %p102 = por %p100, %p101
      %s104 = sadd.s32 %s103, 1
      %p107 = scmp.eq.s32.totalorder %s22, 1
      %p108 = scmp.ne.s32.totalorder %s103, %s105
      %p109 = scmp.eq.s32.totalorder %s22, 0
      %p110 = por %p108, %p109
      %p111 = scmp.ne.s32.totalorder %s103, %s105
      %p112 = scmp.eq.s32.totalorder %s27, 1
      %p113 = por %p111, %p112
      %p114 = scmp.ne.s32.totalorder %s105, %s106
      %p115 = scmp.eq.s32.totalorder %s27, 0
      %p116 = por %p114, %p115
      %p117 = scmp.ne.s32.totalorder %s105, %s106
      %p118 = scmp.eq.s32.totalorder %s28, 1
      %p119 = por %p117, %p118
      %p121 = scmp.ne.s32.totalorder %s106, %s120
      %p122 = scmp.eq.s32.totalorder %s28, 0
      %p123 = por %p121, %p122
      %s125 = sadd.s32 %s124, 1
      %p128 = scmp.eq.s32.totalorder %s22, 1
      %p129 = scmp.ne.s32.totalorder %s124, %s126
      %p130 = scmp.eq.s32.totalorder %s22, 0
      %p131 = por %p129, %p130
      %p132 = scmp.ne.s32.totalorder %s124, %s126
      %p133 = scmp.eq.s32.totalorder %s27, 1
      %p134 = por %p132, %p133
      %p135 = scmp.ne.s32.totalorder %s126, %s127
      %p136 = scmp.eq.s32.totalorder %s27, 0
      %p137 = por %p135, %p136
      %p138 = scmp.ne.s32.totalorder %s126, %s127
      %p139 = scmp.eq.s32.totalorder %s28, 1
      %p140 = por %p138, %p139
      %p142 = scmp.ne.s32.totalorder %s127, %s141
      %p143 = scmp.eq.s32.totalorder %s28, 0
      %p144 = por %p142, %p143
      %s146 = sadd.s32 %s145, 1
      %p149 = scmp.eq.s32.totalorder %s22, 1
      %p150 = scmp.ne.s32.totalorder %s145, %s147
      %p151 = scmp.eq.s32.totalorder %s22, 0
      %p152 = por %p150, %p151
      %p153 = scmp.ne.s32.totalorder %s145, %s147
      %p154 = scmp.eq.s32.totalorder %s27, 1
      %p155 = por %p153, %p154
      %p156 = scmp.ne.s32.totalorder %s147, %s148
      %p157 = scmp.eq.s32.totalorder %s27, 0
      %p158 = por %p156, %p157
      %p159 = scmp.ne.s32.totalorder %s147, %s148
      %p160 = scmp.eq.s32.totalorder %s28, 1
      %p161 = por %p159, %p160
      %p163 = scmp.ne.s32.totalorder %s148, %s162
      %p164 = scmp.eq.s32.totalorder %s28, 0
      %p165 = por %p163, %p164
      %s167 = sadd.s32 %s166, 1
      %p170 = scmp.eq.s32.totalorder %s22, 1
      %p171 = scmp.ne.s32.totalorder %s166, %s168
      %p172 = scmp.eq.s32.totalorder %s22, 0
      %p173 = por %p171, %p172
      %p174 = scmp.ne.s32.totalorder %s166, %s168
      %p175 = scmp.eq.s32.totalorder %s27, 1
      %p176 = por %p174, %p175
      %p177 = scmp.ne.s32.totalorder %s168, %s169
      %p178 = scmp.eq.s32.totalorder %s27, 0
      %p179 = por %p177, %p178
      %p180 = scmp.ne.s32.totalorder %s168, %s169
      %p181 = scmp.eq.s32.totalorder %s28, 1
      %p182 = por %p180, %p181
      %p184 = scmp.ne.s32.totalorder %s169, %s183
      %p185 = scmp.eq.s32.totalorder %s28, 0
      %p186 = por %p184, %p185
      %s188 = sadd.s32 %s187, 1
      %p191 = scmp.eq.s32.totalorder %s22, 1
      %p192 = scmp.ne.s32.totalorder %s187, %s189
      %p193 = scmp.eq.s32.totalorder %s22, 0
      %p194 = por %p192, %p193
      %p195 = scmp.ne.s32.totalorder %s187, %s189
      %p196 = scmp.eq.s32.totalorder %s27, 1
      %p197 = por %p195, %p196
      %p198 = scmp.ne.s32.totalorder %s189, %s190
      %p199 = scmp.eq.s32.totalorder %s27, 0
      %p200 = por %p198, %p199
      %p201 = scmp.ne.s32.totalorder %s189, %s190
      %p202 = scmp.eq.s32.totalorder %s28, 1
      %p203 = por %p201, %p202
      %p205 = scmp.ne.s32.totalorder %s190, %s204
      %p206 = scmp.eq.s32.totalorder %s28, 0
      %p207 = por %p205, %p206
      %s208 = ssub.s32 %s22, %s29
      %p209 = scmp.eq.s32.totalorder %s208, 0
      %s211 = sadd.s32 %s210, 1
      %s212 = scalar_select %p209, %s210, %s211
      %p215 = pneg %p209
      %p216 = scmp.eq.s32.totalorder %s22, 1
      %p217 = por %p215, %p216
      %p218 = scmp.ne.s32.totalorder %s210, %s213
      %p219 = scmp.eq.s32.totalorder %s22, 0
      %p220 = por %p218, %p219
      %p221 = scmp.ne.s32.totalorder %s210, %s213
      %p222 = scmp.eq.s32.totalorder %s27, 1
      %p223 = por %p221, %p222
      %p224 = scmp.ne.s32.totalorder %s213, %s214
      %p225 = scmp.eq.s32.totalorder %s27, 0
      %p226 = por %p224, %p225
      %p227 = scmp.ne.s32.totalorder %s213, %s214
      %p228 = scmp.eq.s32.totalorder %s28, 1
      %p229 = por %p227, %p228
      %p231 = scmp.ne.s32.totalorder %s214, %s230
      %p232 = scmp.eq.s32.totalorder %s28, 0
      %p233 = por %p231, %p232
      %p234 = scmp.le.s32.totalorder 1, %s22
      %p235 = scmp.lt.s32.totalorder %s22, 3
      %p236 = pnand %p234, %p235
      %p237 = pneg %p236
      // Predicated region
      $region9: #{tpu_custom_call.1} parent=5 // pred_check
        _
      $region10: #{tpu_custom_call.1} parent=5 // pred_check_branch
        %239 = sbr.rel (%p236) target = $region12
      $region11: #{tpu_custom_call.1} parent=5 // pred_region
        %s240 = ssub.s32 %s22, 1
        // Predicated region
        $region13: #{tpu_custom_call.1} parent=11 // pred_check
          %p241 = pneg %p95
        $region14: #{tpu_custom_call.1} parent=11 // pred_check_branch
          %243 = sbr.rel (%p241) target = $region16
        $region15: #{tpu_custom_call.1} parent=11 // pred_region
          _
        $region16: #{tpu_custom_call.1} parent=11 // pred_fallthru
          _
        // Predicated region
        $region17: #{tpu_custom_call.1} parent=11 // pred_check
          %p244 = pneg %p116
        $region18: #{tpu_custom_call.1} parent=11 // pred_check_branch
          %246 = sbr.rel (%p244) target = $region20
        $region19: #{tpu_custom_call.1} parent=11 // pred_region
          _
        $region20: #{tpu_custom_call.1} parent=11 // pred_fallthru
          _
        // Predicated region
        $region21: #{tpu_custom_call.1} parent=11 // pred_check
          %p247 = pneg %p137
        $region22: #{tpu_custom_call.1} parent=11 // pred_check_branch
          %249 = sbr.rel (%p247) target = $region24
        $region23: #{tpu_custom_call.1} parent=11 // pred_region
          _
        $region24: #{tpu_custom_call.1} parent=11 // pred_fallthru
          _
        // Predicated region
        $region25: #{tpu_custom_call.1} parent=11 // pred_check
          %p250 = pneg %p158
        $region26: #{tpu_custom_call.1} parent=11 // pred_check_branch
          %252 = sbr.rel (%p250) target = $region28
        $region27: #{tpu_custom_call.1} parent=11 // pred_region
          _
        $region28: #{tpu_custom_call.1} parent=11 // pred_fallthru
          _
        // Predicated region
        $region29: #{tpu_custom_call.1} parent=11 // pred_check
          %p253 = pneg %p179
        $region30: #{tpu_custom_call.1} parent=11 // pred_check_branch
          %255 = sbr.rel (%p253) target = $region32
        $region31: #{tpu_custom_call.1} parent=11 // pred_region
          _
        $region32: #{tpu_custom_call.1} parent=11 // pred_fallthru
          _
        // Predicated region
        $region33: #{tpu_custom_call.1} parent=11 // pred_check
          %p256 = pneg %p200
        $region34: #{tpu_custom_call.1} parent=11 // pred_check_branch
          %258 = sbr.rel (%p256) target = $region36
        $region35: #{tpu_custom_call.1} parent=11 // pred_region
          _
        $region36: #{tpu_custom_call.1} parent=11 // pred_fallthru
          _
      $region12: #{tpu_custom_call.1} parent=5 // pred_fallthru
        _
      %p259 = scmp.lt.s32.totalorder %s22, 2
      // Predicated region
      $region37: #{tpu_custom_call.1} parent=5 // pred_check
        %p260 = pneg %p259
      $region38: #{tpu_custom_call.1} parent=5 // pred_check_branch
        %262 = sbr.rel (%p260) target = $region40
      $region39: #{tpu_custom_call.1} parent=5 // pred_region
        // Predicated region
        $region41: #{tpu_custom_call.1} parent=39 // pred_check
          %p263 = pneg %p42
        $region42: #{tpu_custom_call.1} parent=39 // pred_check_branch
          %265 = sbr.rel (%p263) target = $region44
        $region43: #{tpu_custom_call.1} parent=39 // pred_region
          %s266 = smul.u32 4, %s22
          %p267 = scmp.lt.s32.totalorder %s266, 7
          %s268 = scalar_select %p267, %s266, 7
          %s269 = smul.addr %s268, 2
          %s270 = scalar_lea.vmem %s0, %s269
          %s271 = smul.u32 4, %s22
        $region44: #{tpu_custom_call.1} parent=39 // pred_fallthru
          _
        // Predicated region
        $region45: #{tpu_custom_call.1} parent=39 // pred_check
          %p272 = pneg %p68
        $region46: #{tpu_custom_call.1} parent=39 // pred_check_branch
          %274 = sbr.rel (%p272) target = $region48
        $region47: #{tpu_custom_call.1} parent=39 // pred_region
          %s275 = sand.u32 %s58, 1
          %s276 = scalar_lea.sflag [#allocation4], %s275
          %s277 = sand.u32 %s58, 1
          %s278 = smul.addr %s277, 8
          %s279 = scalar_lea.vmem [#allocation3], %s278
          %s280 = smul.u32 4, %s22
          %s282 = ssub.s32 128, 128
          %283 = vsyncadd %s276, %s282
          %s284 = smul.addr %s280, 32
          %s285 = scalar_lea.hbm %s1, %s284
          %s287 = sshll.u32 %s279, 4
          %s288 = int_to_ptr.vmem [resolvable:$true] %s287
          %290 = dma.hbm_to_vmem [thread:$0]  %s285, 128, %s288, %s276
        $region48: #{tpu_custom_call.1} parent=39 // pred_fallthru
          _
      $region40: #{tpu_custom_call.1} parent=5 // pred_fallthru
        _
      %p291 = scmp.le.s32.totalorder 1, %s22
      %p292 = scmp.lt.s32.totalorder %s22, 3
      %p293 = pnand %p291, %p292
      %p294 = pneg %p293
      // Predicated region
      $region49: #{tpu_custom_call.1} parent=5 // pred_check
        _
      $region50: #{tpu_custom_call.1} parent=5 // pred_check_branch
        %296 = sbr.rel (%p293) target = $region52
      $region51: #{tpu_custom_call.1} parent=5 // pred_region
        %s297 = ssub.s32 %s22, 1
        %s298 = sand.u32 %s61, 1
        %s299 = scalar_lea.sflag [#allocation4], %s298
        %s300 = sand.u32 %s61, 1
        %s301 = smul.addr %s300, 8
        %s302 = scalar_lea.vmem [#allocation3], %s301
        // Predicated region
        $region53: #{tpu_custom_call.1} parent=51 // pred_check
          %p303 = pneg %p74
        $region54: #{tpu_custom_call.1} parent=51 // pred_check_branch
          %305 = sbr.rel (%p303) target = $region56
        $region55: #{tpu_custom_call.1} parent=51 // pred_region
          %306 = dma.done %s299, 128
        $region56: #{tpu_custom_call.1} parent=51 // pred_fallthru
          _
        %s307 = smul.u32 4, %s27
        %p308 = scmp.lt.s32.totalorder %s307, 7
        %s309 = scalar_select %p308, %s307, 7
        %s310 = smul.addr %s309, 2
        %s311 = scalar_lea.vmem %s0, %s310
        %p312 = pneg %p48
        %p313 = pneg %p45
        %s314 = sand.u32 %s61, 1
        %s315 = scalar_lea.sflag [#allocation4], %s314
        %s316 = sand.u32 %s61, 1
        %s317 = smul.addr %s316, 8
        %s318 = scalar_lea.vmem [#allocation3], %s317
        %p319 = pneg %p74
        %p320 = pneg %p71
        %p321 = pneg %p95
        %p322 = pneg %p92
        %p323 = pneg %p116
        %p324 = pneg %p113
        %p325 = pneg %p137
        %p326 = pneg %p134
        %p327 = pneg %p158
        %p328 = pneg %p155
        %p329 = pneg %p179
        %p330 = pneg %p176
        %p331 = pneg %p200
        %p332 = pneg %p197
        %p333 = pneg %p226
        %p334 = pneg %p223
        %s335 = sand.u32 %s213, 1
        %s336 = scalar_lea.sflag [#allocation5], %s335
        %s337 = sand.u32 %s213, 1
        %s338 = smul.addr %s337, 4
        %s339 = scalar_lea.vmem [#allocation6], %s338
        %s340 = smul.u32 4, %s27
        %p341 = scmp.lt.s32.totalorder %s340, 7
        %s342 = scalar_select %p341, %s340, 7
        %s343 = smul.addr %s342, 2
        %s344 = scalar_lea.vmem %s0, %s343
        %s345 = smul.u32 4, %s27
        %s346 = smul.u32 4, %s27
        %s347 = smul.u32 4, %s27
        %v348 = vld [vmem:[%s344] sm:$0xff]
        %v349 = vlaneseq
        %v350 = vshrl.u32 %v349, 7
        %v351 = vadd.s32 %v350, 8
        %v352 = vadd.s32 %v350, 16
        %v353 = vadd.s32 %v350, 24
        %v354 = vlaneseq
        %v355 = vshrl.u32 %v354, 7
        %v356 = vsub.s32 0, %v355
        %v357 = vrot.slane %v348, %v356
        %v358 = vlaneseq
        %v359 = vshrl.u32 %v358, 7
        %v360 = vsub.s32 2, %v359
        %v361 = vrot.slane %v348, %v360
        %v362 = vlaneseq
        %v363 = vshrl.u32 %v362, 7
        %v364 = vsub.s32 4, %v363
        %v365 = vrot.slane %v348, %v364
        %v366 = vlaneseq
        %v367 = vshrl.u32 %v366, 7
        %v368 = vsub.s32 6, %v367
        %v369 = vrot.slane %v348, %v368
        %v370 = vlaneseq
        %v371 = vshrl.u32 %v370, 7
        %v372 = vsub.s32 0, %v371
        %v373 = vrot.slane %v357, %v372
        %v374 = vlaneseq
        %v375 = vshrl.u32 %v374, 7
        %v376 = vsub.s32 0, %v375
        %v377 = vrot.slane %v361, %v376
        %v378 = vlaneseq
        %v379 = vshrl.u32 %v378, 7
        %v380 = vsub.s32 0, %v379
        %v381 = vrot.slane %v365, %v380
        %v382 = vlaneseq
        %v383 = vshrl.u32 %v382, 7
        %v384 = vsub.s32 0, %v383
        %v385 = vrot.slane %v369, %v384
        %vm386 = vcmp.eq.s32.totalorder %v350, %v373
        %vm387 = vcmp.eq.s32.totalorder %v350, %v377
        %vm388 = vcmp.eq.s32.totalorder %v350, %v381
        %vm389 = vcmp.eq.s32.totalorder %v350, %v385
        %vm390 = vcmp.eq.s32.totalorder %v351, %v373
        %vm391 = vcmp.eq.s32.totalorder %v351, %v377
        %vm392 = vcmp.eq.s32.totalorder %v351, %v381
        %vm393 = vcmp.eq.s32.totalorder %v351, %v385
        %vm394 = vcmp.eq.s32.totalorder %v352, %v373
        %vm395 = vcmp.eq.s32.totalorder %v352, %v377
        %vm396 = vcmp.eq.s32.totalorder %v352, %v381
        %vm397 = vcmp.eq.s32.totalorder %v352, %v385
        %vm398 = vcmp.eq.s32.totalorder %v353, %v373
        %vm399 = vcmp.eq.s32.totalorder %v353, %v377
        %vm400 = vcmp.eq.s32.totalorder %v353, %v381
        %vm401 = vcmp.eq.s32.totalorder %v353, %v385
        %v402 = vsel %vm386, 1, 0
        %v403 = vsel %vm387, 1, 0
        %v404 = vsel %vm388, 1, 0
        %v405 = vsel %vm389, 1, 0
        %v406 = vsel %vm390, 1, 0
        %v407 = vsel %vm391, 1, 0
        %v408 = vsel %vm392, 1, 0
        %v409 = vsel %vm393, 1, 0
        %v410 = vsel %vm394, 1, 0
        %v411 = vsel %vm395, 1, 0
        %v412 = vsel %vm396, 1, 0
        %v413 = vsel %vm397, 1, 0
        %v414 = vsel %vm398, 1, 0
        %v415 = vsel %vm399, 1, 0
        %v416 = vsel %vm400, 1, 0
        %v417 = vsel %vm401, 1, 0
        %v418 = vcvt.s32.f32 %v402
        %v419 = vcvt.s32.f32 %v403
        %v420 = vcvt.s32.f32 %v404
        %v421 = vcvt.s32.f32 %v405
        %v422 = vcvt.s32.f32 %v406
        %v423 = vcvt.s32.f32 %v407
        %v424 = vcvt.s32.f32 %v408
        %v425 = vcvt.s32.f32 %v409
        %v426 = vcvt.s32.f32 %v410
        %v427 = vcvt.s32.f32 %v411
        %v428 = vcvt.s32.f32 %v412
        %v429 = vcvt.s32.f32 %v413
        %v430 = vcvt.s32.f32 %v414
        %v431 = vcvt.s32.f32 %v415
        %v432 = vcvt.s32.f32 %v416
        %v433 = vcvt.s32.f32 %v417
        %v434 = vlaneseq
        %v435 = vshrl.u32 %v434, 7
        %v436 = vsub.s32 1, %v435
        %v437 = vrot.slane %v348, %v436
        %v438 = vlaneseq
        %v439 = vshrl.u32 %v438, 7
        %v440 = vsub.s32 3, %v439
        %v441 = vrot.slane %v348, %v440
        %v442 = vlaneseq
        %v443 = vshrl.u32 %v442, 7
        %v444 = vsub.s32 5, %v443
        %v445 = vrot.slane %v348, %v444
        %v446 = vlaneseq
        %v447 = vshrl.u32 %v446, 7
        %v448 = vsub.s32 7, %v447
        %v449 = vrot.slane %v348, %v448
        %v450 = vlaneseq
        %v451 = vshrl.u32 %v450, 7
        %v452 = vsub.s32 1, %v451
        %v453 = vrot.slane %v437, %v452
        %v454 = vlaneseq
        %v455 = vshrl.u32 %v454, 7
        %v456 = vsub.s32 1, %v455
        %v457 = vrot.slane %v441, %v456
        %v458 = vlaneseq
        %v459 = vshrl.u32 %v458, 7
        %v460 = vsub.s32 1, %v459
        %v461 = vrot.slane %v445, %v460
        %v462 = vlaneseq
        %v463 = vshrl.u32 %v462, 7
        %v464 = vsub.s32 1, %v463
        %v465 = vrot.slane %v449, %v464
        %vm466 = vcmp.eq.s32.totalorder %v350, %v453
        %vm467 = vcmp.eq.s32.totalorder %v350, %v457
        %vm468 = vcmp.eq.s32.totalorder %v350, %v461
        %vm469 = vcmp.eq.s32.totalorder %v350, %v465
        %vm470 = vcmp.eq.s32.totalorder %v351, %v453
        %vm471 = vcmp.eq.s32.totalorder %v351, %v457
        %vm472 = vcmp.eq.s32.totalorder %v351, %v461
        %vm473 = vcmp.eq.s32.totalorder %v351, %v465
        %vm474 = vcmp.eq.s32.totalorder %v352, %v453
        %vm475 = vcmp.eq.s32.totalorder %v352, %v457
        %vm476 = vcmp.eq.s32.totalorder %v352, %v461
        %vm477 = vcmp.eq.s32.totalorder %v352, %v465
        %vm478 = vcmp.eq.s32.totalorder %v353, %v453
        %vm479 = vcmp.eq.s32.totalorder %v353, %v457
        %vm480 = vcmp.eq.s32.totalorder %v353, %v461
        %vm481 = vcmp.eq.s32.totalorder %v353, %v465
        %v482 = vsel %vm466, 1, 0
        %v483 = vsel %vm467, 1, 0
        %v484 = vsel %vm468, 1, 0
        %v485 = vsel %vm469, 1, 0
        %v486 = vsel %vm470, 1, 0
        %v487 = vsel %vm471, 1, 0
        %v488 = vsel %vm472, 1, 0
        %v489 = vsel %vm473, 1, 0
        %v490 = vsel %vm474, 1, 0
        %v491 = vsel %vm475, 1, 0
        %v492 = vsel %vm476, 1, 0
        %v493 = vsel %vm477, 1, 0
        %v494 = vsel %vm478, 1, 0
        %v495 = vsel %vm479, 1, 0
        %v496 = vsel %vm480, 1, 0
        %v497 = vsel %vm481, 1, 0
        %v498 = vcvt.s32.f32 %v482
        %v499 = vcvt.s32.f32 %v483
        %v500 = vcvt.s32.f32 %v484
        %v501 = vcvt.s32.f32 %v485
        %v502 = vcvt.s32.f32 %v486
        %v503 = vcvt.s32.f32 %v487
        %v504 = vcvt.s32.f32 %v488
        %v505 = vcvt.s32.f32 %v489
        %v506 = vcvt.s32.f32 %v490
        %v507 = vcvt.s32.f32 %v491
        %v508 = vcvt.s32.f32 %v492
        %v509 = vcvt.s32.f32 %v493
        %v510 = vcvt.s32.f32 %v494
        %v511 = vcvt.s32.f32 %v495
        %v512 = vcvt.s32.f32 %v496
        %v513 = vcvt.s32.f32 %v497
        %v514 = vld [vmem:[%s2] sm:$0xff]
        %v515 = vld [vmem:[%s3] sm:$0xff]
        %vm516 = vcmask 261120
        %v518 = vsel %vm516, %v515, 0
        %520 = vmatprep.subr.mxu0 %v499
        %521 = vmatpush1.msra.mxu0 %v498
        %522 = vmatprep.subr.mxu0 %v503
        %523 = vmatpush1.msra.mxu0 %v502
        %524 = vmatprep.subr.mxu0 %v507
        %525 = vmatpush1.msra.mxu0 %v506
        %526 = vmatprep.subr.mxu0 %v511
        %527 = vmatpush1.msra.mxu0 %v510
        %528 = vmatprep.subr.mxu0 0.0
        %529 = vmatpush1.msra.mxu0 0.0
        %530 = vmatprep.subr.mxu0 0.0
        %531 = vmatpush1.msra.mxu0 0.0
        %532 = vmatprep.subr.mxu0 0.0
        %533 = vmatpush1.msra.mxu0 0.0
        %534 = vmatprep.subr.mxu0 0.0
        %535 = vmatpush1.msra.mxu0 0.0
        %536 = vmatprep.subr.mxu0 0.0
        %537 = vmatpush1.msra.mxu0 0.0
        %538 = vmatprep.subr.mxu0 0.0
        %539 = vmatpush1.msra.mxu0 0.0
        %540 = vmatprep.subr.mxu0 0.0
        %541 = vmatpush1.msra.mxu0 0.0
        %542 = vmatprep.subr.mxu0 0.0
        %543 = vmatpush1.msra.mxu0 0.0
        %544 = vmatprep.subr.mxu0 0.0
        %545 = vmatpush1.msra.mxu0 0.0
        %546 = vmatprep.subr.mxu0 0.0
        %547 = vmatpush1.msra.mxu0 0.0
        %548 = vmatprep.subr.mxu0 0.0
        %549 = vmatpush1.msra.mxu0 0.0
        %550 = vmatprep.subr.mxu0 0.0
        %551 = vmatpush1.msra.mxu0 0.0
        %552 = vmatprep.subr.mxu0 0.0
        %553 = vmatpush1.msra.mxu0 0.0
        %554 = vmatprep.subr.mxu0 0.0
        %555 = vmatpush1.msra.mxu0 0.0
        %556 = vmatprep.subr.mxu0 0.0
        %557 = vmatpush1.msra.mxu0 0.0
        %558 = vmatprep.subr.mxu0 0.0
        %559 = vmatpush1.msra.mxu0 0.0
        %560 = vmatprep.subr.mxu0 0.0
        %561 = vmatpush1.msra.mxu0 0.0
        %562 = vmatprep.subr.mxu0 0.0
        %563 = vmatpush1.msra.mxu0 0.0
        %564 = vmatprep.subr.mxu0 0.0
        %565 = vmatpush1.msra.mxu0 0.0
        %566 = vmatprep.subr.mxu0 0.0
        %567 = vmatpush1.msra.mxu0 0.0
        %568 = vmatprep.subr.mxu0 0.0
        %569 = vmatpush1.msra.mxu0 0.0
        %570 = vmatprep.subr.mxu0 0.0
        %571 = vmatpush1.msra.mxu0 0.0
        %572 = vmatprep.subr.mxu0 0.0
        %573 = vmatpush1.msra.mxu0 0.0
        %574 = vmatprep.subr.mxu0 0.0
        %575 = vmatpush1.msra.mxu0 0.0
        %576 = vmatprep.subr.mxu0 0.0
        %577 = vmatpush1.msra.mxu0 0.0
        %578 = vmatprep.subr.mxu0 0.0
        %579 = vmatpush1.msra.mxu0 0.0
        %580 = vmatprep.subr.mxu0 0.0
        %581 = vmatpush1.msra.mxu0 0.0
        %582 = vmatprep.subr.mxu0 0.0
        %583 = vmatpush1.msra.mxu0 0.0
        %584 = vmatprep.mubr.f32.mxu0 0.0
        %585 = vmatmul.mubr.f32.gmra.mrb[0].mxu0 %v518
        %v586 = vpop.f32.mrb[0].mxu0
        %v587 = vadd.f32 0.0, %v586
        %v588 = vpop.f32.mrb[0].mxu0
        %v589 = vadd.f32 0.0, %v588
        %590 = vdwg.mxu0
        %591 = vmatprep.subr.mxu0 %v501
        %592 = vmatpush1.msra.mxu0 %v500
        %593 = vmatprep.subr.mxu0 %v505
        %594 = vmatpush1.msra.mxu0 %v504
        %595 = vmatprep.subr.mxu0 %v509
        %596 = vmatpush1.msra.mxu0 %v508
        %597 = vmatprep.subr.mxu0 %v513
        %598 = vmatpush1.msra.mxu0 %v512
        %599 = vmatprep.subr.mxu0 0.0
        %600 = vmatpush1.msra.mxu0 0.0
        %601 = vmatprep.subr.mxu0 0.0
        %602 = vmatpush1.msra.mxu0 0.0
        %603 = vmatprep.subr.mxu0 0.0
        %604 = vmatpush1.msra.mxu0 0.0
        %605 = vmatprep.subr.mxu0 0.0
        %606 = vmatpush1.msra.mxu0 0.0
        %607 = vmatprep.subr.mxu0 0.0
        %608 = vmatpush1.msra.mxu0 0.0
        %609 = vmatprep.subr.mxu0 0.0
        %610 = vmatpush1.msra.mxu0 0.0
        %611 = vmatprep.subr.mxu0 0.0
        %612 = vmatpush1.msra.mxu0 0.0
        %613 = vmatprep.subr.mxu0 0.0
        %614 = vmatpush1.msra.mxu0 0.0
        %615 = vmatprep.subr.mxu0 0.0
        %616 = vmatpush1.msra.mxu0 0.0
        %617 = vmatprep.subr.mxu0 0.0
        %618 = vmatpush1.msra.mxu0 0.0
        %619 = vmatprep.subr.mxu0 0.0
        %620 = vmatpush1.msra.mxu0 0.0
        %621 = vmatprep.subr.mxu0 0.0
        %622 = vmatpush1.msra.mxu0 0.0
        %623 = vmatprep.subr.mxu0 0.0
        %624 = vmatpush1.msra.mxu0 0.0
        %625 = vmatprep.subr.mxu0 0.0
        %626 = vmatpush1.msra.mxu0 0.0
        %627 = vmatprep.subr.mxu0 0.0
        %628 = vmatpush1.msra.mxu0 0.0
        %629 = vmatprep.subr.mxu0 0.0
        %630 = vmatpush1.msra.mxu0 0.0
        %631 = vmatprep.subr.mxu0 0.0
        %632 = vmatpush1.msra.mxu0 0.0
        %633 = vmatprep.subr.mxu0 0.0
        %634 = vmatpush1.msra.mxu0 0.0
        %635 = vmatprep.subr.mxu0 0.0
        %636 = vmatpush1.msra.mxu0 0.0
        %637 = vmatprep.subr.mxu0 0.0
        %638 = vmatpush1.msra.mxu0 0.0
        %639 = vmatprep.subr.mxu0 0.0
        %640 = vmatpush1.msra.mxu0 0.0
        %641 = vmatprep.subr.mxu0 0.0
        %642 = vmatpush1.msra.mxu0 0.0
        %643 = vmatprep.subr.mxu0 0.0
        %644 = vmatpush1.msra.mxu0 0.0
        %645 = vmatprep.subr.mxu0 0.0
        %646 = vmatpush1.msra.mxu0 0.0
        %647 = vmatprep.subr.mxu0 0.0
        %648 = vmatpush1.msra.mxu0 0.0
        %649 = vmatprep.subr.mxu0 0.0
        %650 = vmatpush1.msra.mxu0 0.0
        %651 = vmatprep.subr.mxu0 0.0
        %652 = vmatpush1.msra.mxu0 0.0
        %653 = vmatprep.subr.mxu0 0.0
        %654 = vmatpush1.msra.mxu0 0.0
        %655 = vmatprep.mubr.f32.mxu0 0.0
        %656 = vmatmul.mubr.f32.gmra.mrb[0].mxu0 %v518
        %v657 = vpop.f32.mrb[0].mxu0
        %v658 = vadd.f32 0.0, %v657
        %v659 = vpop.f32.mrb[0].mxu0
        %v660 = vadd.f32 0.0, %v659
        %661 = vdwg.mxu0
        %v663 = vsel %vm516, %v514, 0
        %665 = vmatprep.subr.mxu0 %v419
        %666 = vmatpush1.msra.mxu0 %v418
        %667 = vmatprep.subr.mxu0 %v423
        %668 = vmatpush1.msra.mxu0 %v422
        %669 = vmatprep.subr.mxu0 %v427
        %670 = vmatpush1.msra.mxu0 %v426
        %671 = vmatprep.subr.mxu0 %v431
        %672 = vmatpush1.msra.mxu0 %v430
        %673 = vmatprep.subr.mxu0 0.0
        %674 = vmatpush1.msra.mxu0 0.0
        %675 = vmatprep.subr.mxu0 0.0
        %676 = vmatpush1.msra.mxu0 0.0
        %677 = vmatprep.subr.mxu0 0.0
        %678 = vmatpush1.msra.mxu0 0.0
        %679 = vmatprep.subr.mxu0 0.0
        %680 = vmatpush1.msra.mxu0 0.0
        %681 = vmatprep.subr.mxu0 0.0
        %682 = vmatpush1.msra.mxu0 0.0
        %683 = vmatprep.subr.mxu0 0.0
        %684 = vmatpush1.msra.mxu0 0.0
        %685 = vmatprep.subr.mxu0 0.0
        %686 = vmatpush1.msra.mxu0 0.0
        %687 = vmatprep.subr.mxu0 0.0
        %688 = vmatpush1.msra.mxu0 0.0
        %689 = vmatprep.subr.mxu0 0.0
        %690 = vmatpush1.msra.mxu0 0.0
        %691 = vmatprep.subr.mxu0 0.0
        %692 = vmatpush1.msra.mxu0 0.0
        %693 = vmatprep.subr.mxu0 0.0
        %694 = vmatpush1.msra.mxu0 0.0
        %695 = vmatprep.subr.mxu0 0.0
        %696 = vmatpush1.msra.mxu0 0.0
        %697 = vmatprep.subr.mxu0 0.0
        %698 = vmatpush1.msra.mxu0 0.0
        %699 = vmatprep.subr.mxu0 0.0
        %700 = vmatpush1.msra.mxu0 0.0
        %701 = vmatprep.subr.mxu0 0.0
        %702 = vmatpush1.msra.mxu0 0.0
        %703 = vmatprep.subr.mxu0 0.0
        %704 = vmatpush1.msra.mxu0 0.0
        %705 = vmatprep.subr.mxu0 0.0
        %706 = vmatpush1.msra.mxu0 0.0
        %707 = vmatprep.subr.mxu0 0.0
        %708 = vmatpush1.msra.mxu0 0.0
        %709 = vmatprep.subr.mxu0 0.0
        %710 = vmatpush1.msra.mxu0 0.0
        %711 = vmatprep.subr.mxu0 0.0
        %712 = vmatpush1.msra.mxu0 0.0
        %713 = vmatprep.subr.mxu0 0.0
        %714 = vmatpush1.msra.mxu0 0.0
        %715 = vmatprep.subr.mxu0 0.0
        %716 = vmatpush1.msra.mxu0 0.0
        %717 = vmatprep.subr.mxu0 0.0
        %718 = vmatpush1.msra.mxu0 0.0
        %719 = vmatprep.subr.mxu0 0.0
        %720 = vmatpush1.msra.mxu0 0.0
        %721 = vmatprep.subr.mxu0 0.0
        %722 = vmatpush1.msra.mxu0 0.0
        %723 = vmatprep.subr.mxu0 0.0
        %724 = vmatpush1.msra.mxu0 0.0
        %725 = vmatprep.subr.mxu0 0.0
        %726 = vmatpush1.msra.mxu0 0.0
        %727 = vmatprep.subr.mxu0 0.0
        %728 = vmatpush1.msra.mxu0 0.0
        %729 = vmatprep.mubr.f32.mxu0 0.0
        %730 = vmatmul.mubr.f32.gmra.mrb[0].mxu0 %v663
        %v731 = vpop.f32.mrb[0].mxu0
        %v732 = vadd.f32 %v587, %v731
        %v733 = vpop.f32.mrb[0].mxu0
        %v734 = vadd.f32 %v589, %v733
        %735 = vdwg.mxu0
        %736 = vmatprep.subr.mxu0 %v421
        %737 = vmatpush1.msra.mxu0 %v420
        %738 = vmatprep.subr.mxu0 %v425
        %739 = vmatpush1.msra.mxu0 %v424
        %740 = vmatprep.subr.mxu0 %v429
        %741 = vmatpush1.msra.mxu0 %v428
        %742 = vmatprep.subr.mxu0 %v433
        %743 = vmatpush1.msra.mxu0 %v432
        %744 = vmatprep.subr.mxu0 0.0
        %745 = vmatpush1.msra.mxu0 0.0
        %746 = vmatprep.subr.mxu0 0.0
        %747 = vmatpush1.msra.mxu0 0.0
        %748 = vmatprep.subr.mxu0 0.0
        %749 = vmatpush1.msra.mxu0 0.0
        %750 = vmatprep.subr.mxu0 0.0
        %751 = vmatpush1.msra.mxu0 0.0
        %752 = vmatprep.subr.mxu0 0.0
        %753 = vmatpush1.msra.mxu0 0.0
        %754 = vmatprep.subr.mxu0 0.0
        %755 = vmatpush1.msra.mxu0 0.0
        %756 = vmatprep.subr.mxu0 0.0
        %757 = vmatpush1.msra.mxu0 0.0
        %758 = vmatprep.subr.mxu0 0.0
        %759 = vmatpush1.msra.mxu0 0.0
        %760 = vmatprep.subr.mxu0 0.0
        %761 = vmatpush1.msra.mxu0 0.0
        %762 = vmatprep.subr.mxu0 0.0
        %763 = vmatpush1.msra.mxu0 0.0
        %764 = vmatprep.subr.mxu0 0.0
        %765 = vmatpush1.msra.mxu0 0.0
        %766 = vmatprep.subr.mxu0 0.0
        %767 = vmatpush1.msra.mxu0 0.0
        %768 = vmatprep.subr.mxu0 0.0
        %769 = vmatpush1.msra.mxu0 0.0
        %770 = vmatprep.subr.mxu0 0.0
        %771 = vmatpush1.msra.mxu0 0.0
        %772 = vmatprep.subr.mxu0 0.0
        %773 = vmatpush1.msra.mxu0 0.0
        %774 = vmatprep.subr.mxu0 0.0
        %775 = vmatpush1.msra.mxu0 0.0
        %776 = vmatprep.subr.mxu0 0.0
        %777 = vmatpush1.msra.mxu0 0.0
        %778 = vmatprep.subr.mxu0 0.0
        %779 = vmatpush1.msra.mxu0 0.0
        %780 = vmatprep.subr.mxu0 0.0
        %781 = vmatpush1.msra.mxu0 0.0
        %782 = vmatprep.subr.mxu0 0.0
        %783 = vmatpush1.msra.mxu0 0.0
        %784 = vmatprep.subr.mxu0 0.0
        %785 = vmatpush1.msra.mxu0 0.0
        %786 = vmatprep.subr.mxu0 0.0
        %787 = vmatpush1.msra.mxu0 0.0
        %788 = vmatprep.subr.mxu0 0.0
        %789 = vmatpush1.msra.mxu0 0.0
        %790 = vmatprep.subr.mxu0 0.0
        %791 = vmatpush1.msra.mxu0 0.0
        %792 = vmatprep.subr.mxu0 0.0
        %793 = vmatpush1.msra.mxu0 0.0
        %794 = vmatprep.subr.mxu0 0.0
        %795 = vmatpush1.msra.mxu0 0.0
        %796 = vmatprep.subr.mxu0 0.0
        %797 = vmatpush1.msra.mxu0 0.0
        %798 = vmatprep.subr.mxu0 0.0
        %799 = vmatpush1.msra.mxu0 0.0
        %800 = vmatprep.mubr.f32.mxu0 0.0
        %801 = vmatmul.mubr.f32.gmra.mrb[0].mxu0 %v663
        %v802 = vpop.f32.mrb[0].mxu0
        %v803 = vadd.f32 %v658, %v802
        %v804 = vpop.f32.mrb[0].mxu0
        %v805 = vadd.f32 %v660, %v804
        %806 = vdwg.mxu0
        %v807 = vld [vmem:[%s4] sm:$0xff]
        %v808 = vld [vmem:[%s302] sm:$0xff]
        %v810 = vcombine.high %v808, %v808
        %v812 = vunpack.c.l.s4 1983009808
        %v813 = vunpack.c.0.s8 %v812
        %v814 = vlaneseq
        %v815 = vshrl.u32 %v814, 7
        %v816 = vsub.s32 %v813, %v815
        %v817 = vrot.slane %v808, %v816
        %v819 = vunpack.c.l.s4 1983009808
        %v820 = vunpack.c.0.s8 %v819
        %v821 = vlaneseq
        %v822 = vshrl.u32 %v821, 7
        %v823 = vsub.s32 %v820, %v822
        %v824 = vrot.slane %v810, %v823
        %v825 = vcombine.high %v817, %v817
        %v826 = vcombine.high %v824, %v824
        %vm827 = vcmask 15360
        %v829 = vsel %vm827, %v807, 0
        %vm831 = vcmask 1041408
        %v832 = vsel %vm831, %v817, 0
        %v834 = vsel %vm831, %v825, 0
        %v836 = vsel %vm831, %v824, 0
        %v838 = vsel %vm831, %v826, 0
        %840 = vmatprep.subr.mxu0 %v834
        %841 = vmatpush1.msra.mxu0 %v832
        %842 = vmatprep.subr.mxu0 0.0
        %843 = vmatpush1.msra.mxu0 0.0
        %844 = vmatprep.subr.mxu0 0.0
        %845 = vmatpush1.msra.mxu0 0.0
        %846 = vmatprep.subr.mxu0 0.0
        %847 = vmatpush1.msra.mxu0 0.0
        %848 = vmatprep.subr.mxu0 0.0
        %849 = vmatpush1.msra.mxu0 0.0
        %850 = vmatprep.subr.mxu0 0.0
        %851 = vmatpush1.msra.mxu0 0.0
        %852 = vmatprep.subr.mxu0 0.0
        %853 = vmatpush1.msra.mxu0 0.0
        %854 = vmatprep.subr.mxu0 0.0
        %855 = vmatpush1.msra.mxu0 0.0
        %856 = vmatprep.subr.mxu0 0.0
        %857 = vmatpush1.msra.mxu0 0.0
        %858 = vmatprep.subr.mxu0 0.0
        %859 = vmatpush1.msra.mxu0 0.0
        %860 = vmatprep.subr.mxu0 0.0
        %861 = vmatpush1.msra.mxu0 0.0
        %862 = vmatprep.subr.mxu0 0.0
        %863 = vmatpush1.msra.mxu0 0.0
        %864 = vmatprep.subr.mxu0 0.0
        %865 = vmatpush1.msra.mxu0 0.0
        %866 = vmatprep.subr.mxu0 0.0
        %867 = vmatpush1.msra.mxu0 0.0
        %868 = vmatprep.subr.mxu0 0.0
        %869 = vmatpush1.msra.mxu0 0.0
        %870 = vmatprep.subr.mxu0 0.0
        %871 = vmatpush1.msra.mxu0 0.0
        %872 = vmatprep.subr.mxu0 0.0
        %873 = vmatpush1.msra.mxu0 0.0
        %874 = vmatprep.subr.mxu0 0.0
        %875 = vmatpush1.msra.mxu0 0.0
        %876 = vmatprep.subr.mxu0 0.0
        %877 = vmatpush1.msra.mxu0 0.0
        %878 = vmatprep.subr.mxu0 0.0
        %879 = vmatpush1.msra.mxu0 0.0
        %880 = vmatprep.subr.mxu0 0.0
        %881 = vmatpush1.msra.mxu0 0.0
        %882 = vmatprep.subr.mxu0 0.0
        %883 = vmatpush1.msra.mxu0 0.0
        %884 = vmatprep.subr.mxu0 0.0
        %885 = vmatpush1.msra.mxu0 0.0
        %886 = vmatprep.subr.mxu0 0.0
        %887 = vmatpush1.msra.mxu0 0.0
        %888 = vmatprep.subr.mxu0 0.0
        %889 = vmatpush1.msra.mxu0 0.0
        %890 = vmatprep.subr.mxu0 0.0
        %891 = vmatpush1.msra.mxu0 0.0
        %892 = vmatprep.subr.mxu0 0.0
        %893 = vmatpush1.msra.mxu0 0.0
        %894 = vmatprep.subr.mxu0 0.0
        %895 = vmatpush1.msra.mxu0 0.0
        %896 = vmatprep.subr.mxu0 0.0
        %897 = vmatpush1.msra.mxu0 0.0
        %898 = vmatprep.subr.mxu0 0.0
        %899 = vmatpush1.msra.mxu0 0.0
        %900 = vmatprep.subr.mxu0 0.0
        %901 = vmatpush1.msra.mxu0 0.0
        %902 = vmatprep.subr.mxu0 0.0
        %903 = vmatpush1.msra.mxu0 0.0
        %904 = vmatprep.mubr.f32.mxu0 0.0
        %905 = vmatmul.mubr.f32.gmra.mrb[0].mxu0 %v829
        %v906 = vpop.f32.mrb[0].mxu0
        %v907 = vadd.f32 0.0, %v906
        %v908 = vpop.f32.mrb[0].mxu0
        %v909 = vadd.f32 0.0, %v908
        %910 = vdwg.mxu0
        %911 = vmatprep.subr.mxu0 %v838
        %912 = vmatpush1.msra.mxu0 %v836
        %913 = vmatprep.subr.mxu0 0.0
        %914 = vmatpush1.msra.mxu0 0.0
        %915 = vmatprep.subr.mxu0 0.0
        %916 = vmatpush1.msra.mxu0 0.0
        %917 = vmatprep.subr.mxu0 0.0
        %918 = vmatpush1.msra.mxu0 0.0
        %919 = vmatprep.subr.mxu0 0.0
        %920 = vmatpush1.msra.mxu0 0.0
        %921 = vmatprep.subr.mxu0 0.0
        %922 = vmatpush1.msra.mxu0 0.0
        %923 = vmatprep.subr.mxu0 0.0
        %924 = vmatpush1.msra.mxu0 0.0
        %925 = vmatprep.subr.mxu0 0.0
        %926 = vmatpush1.msra.mxu0 0.0
        %927 = vmatprep.subr.mxu0 0.0
        %928 = vmatpush1.msra.mxu0 0.0
        %929 = vmatprep.subr.mxu0 0.0
        %930 = vmatpush1.msra.mxu0 0.0
        %931 = vmatprep.subr.mxu0 0.0
        %932 = vmatpush1.msra.mxu0 0.0
        %933 = vmatprep.subr.mxu0 0.0
        %934 = vmatpush1.msra.mxu0 0.0
        %935 = vmatprep.subr.mxu0 0.0
        %936 = vmatpush1.msra.mxu0 0.0
        %937 = vmatprep.subr.mxu0 0.0
        %938 = vmatpush1.msra.mxu0 0.0
        %939 = vmatprep.subr.mxu0 0.0
        %940 = vmatpush1.msra.mxu0 0.0
        %941 = vmatprep.subr.mxu0 0.0
        %942 = vmatpush1.msra.mxu0 0.0
        %943 = vmatprep.subr.mxu0 0.0
        %944 = vmatpush1.msra.mxu0 0.0
        %945 = vmatprep.subr.mxu0 0.0
        %946 = vmatpush1.msra.mxu0 0.0
        %947 = vmatprep.subr.mxu0 0.0
        %948 = vmatpush1.msra.mxu0 0.0
        %949 = vmatprep.subr.mxu0 0.0
        %950 = vmatpush1.msra.mxu0 0.0
        %951 = vmatprep.subr.mxu0 0.0
        %952 = vmatpush1.msra.mxu0 0.0
        %953 = vmatprep.subr.mxu0 0.0
        %954 = vmatpush1.msra.mxu0 0.0
        %955 = vmatprep.subr.mxu0 0.0
        %956 = vmatpush1.msra.mxu0 0.0
        %957 = vmatprep.subr.mxu0 0.0
        %958 = vmatpush1.msra.mxu0 0.0
        %959 = vmatprep.subr.mxu0 0.0
        %960 = vmatpush1.msra.mxu0 0.0
        %961 = vmatprep.subr.mxu0 0.0
        %962 = vmatpush1.msra.mxu0 0.0
        %963 = vmatprep.subr.mxu0 0.0
        %964 = vmatpush1.msra.mxu0 0.0
        %965 = vmatprep.subr.mxu0 0.0
        %966 = vmatpush1.msra.mxu0 0.0
        %967 = vmatprep.subr.mxu0 0.0
        %968 = vmatpush1.msra.mxu0 0.0
        %969 = vmatprep.subr.mxu0 0.0
        %970 = vmatpush1.msra.mxu0 0.0
        %971 = vmatprep.subr.mxu0 0.0
        %972 = vmatpush1.msra.mxu0 0.0
        %973 = vmatprep.subr.mxu0 0.0
        %974 = vmatpush1.msra.mxu0 0.0
        %975 = vmatprep.mubr.f32.mxu0 0.0
        %976 = vmatmul.mubr.f32.gmra.mrb[0].mxu0 %v829
        %v977 = vpop.f32.mrb[0].mxu0
        %v978 = vadd.f32 0.0, %v977
        %v979 = vpop.f32.mrb[0].mxu0
        %v980 = vadd.f32 0.0, %v979
        %981 = vdwg.mxu0
        %v982 = vadd.f32 %v732, %v907
        %v983 = vadd.f32 %v734, %v909
        %v984 = vadd.f32 %v803, %v978
        %v985 = vadd.f32 %v805, %v980
        %v986 = vld [vmem:[%s5] sm:$0xff]
        %988 = vset.pattern.permute.xlu0 0
        %989 = vperm.xlu0 %988, %v986
        %v990 = vpop.permute.xlu0 %989
        %v992 = vadd.f32 %v982, %v990
        %v993 = vadd.f32 %v983, %v990
        %v994 = vadd.f32 %v984, %v990
        %v995 = vadd.f32 %v985, %v990
        %v996 = vtanh.pop %v992
        %v997 = vtanh.pop %v993
        %v998 = vtanh.pop %v994
        %v999 = vtanh.pop %v995
        %v1000 = vld [vmem:[%s6] sm:$0x1]
        %v1001 = vld [vmem:[#allocation2] sm:$0x1]
        %1003 = vset.pattern.permute.xlu0 0
        %1004 = vperm.xlu0 %1003, %v1001
        %v1005 = vpop.permute.xlu0 %1004
        %v1007 = vlaneseq
        %v1008 = vshrl.u32 %v1007, 7
        %v1009 = vsub.s32 0, %v1008
        %v1010 = vrot.slane %v1005, %v1009
        %vm1011 = vcmask 64512
        %v1013 = vsel %vm1011, %v1000, 0
        %1015 = vmatprep.subr.mxu0 %v997
        %1016 = vmatpush1.msra.mxu0 %v996
        %1017 = vmatprep.subr.mxu0 0.0
        %1018 = vmatpush1.msra.mxu0 0.0
        %1019 = vmatprep.subr.mxu0 0.0
        %1020 = vmatpush1.msra.mxu0 0.0
        %1021 = vmatprep.subr.mxu0 0.0
        %1022 = vmatpush1.msra.mxu0 0.0
        %1023 = vmatprep.subr.mxu0 0.0
        %1024 = vmatpush1.msra.mxu0 0.0
        %1025 = vmatprep.subr.mxu0 0.0
        %1026 = vmatpush1.msra.mxu0 0.0
        %1027 = vmatprep.subr.mxu0 0.0
        %1028 = vmatpush1.msra.mxu0 0.0
        %1029 = vmatprep.subr.mxu0 0.0
        %1030 = vmatpush1.msra.mxu0 0.0
        %1031 = vmatprep.subr.mxu0 0.0
        %1032 = vmatpush1.msra.mxu0 0.0
        %1033 = vmatprep.subr.mxu0 0.0
        %1034 = vmatpush1.msra.mxu0 0.0
        %1035 = vmatprep.subr.mxu0 0.0
        %1036 = vmatpush1.msra.mxu0 0.0
        %1037 = vmatprep.subr.mxu0 0.0
        %1038 = vmatpush1.msra.mxu0 0.0
        %1039 = vmatprep.subr.mxu0 0.0
        %1040 = vmatpush1.msra.mxu0 0.0
        %1041 = vmatprep.subr.mxu0 0.0
        %1042 = vmatpush1.msra.mxu0 0.0
        %1043 = vmatprep.subr.mxu0 0.0
        %1044 = vmatpush1.msra.mxu0 0.0
        %1045 = vmatprep.subr.mxu0 0.0
        %1046 = vmatpush1.msra.mxu0 0.0
        %1047 = vmatprep.subr.mxu0 0.0
        %1048 = vmatpush1.msra.mxu0 0.0
        %1049 = vmatprep.subr.mxu0 0.0
        %1050 = vmatpush1.msra.mxu0 0.0
        %1051 = vmatprep.subr.mxu0 0.0
        %1052 = vmatpush1.msra.mxu0 0.0
        %1053 = vmatprep.subr.mxu0 0.0
        %1054 = vmatpush1.msra.mxu0 0.0
        %1055 = vmatprep.subr.mxu0 0.0
        %1056 = vmatpush1.msra.mxu0 0.0
        %1057 = vmatprep.subr.mxu0 0.0
        %1058 = vmatpush1.msra.mxu0 0.0
        %1059 = vmatprep.subr.mxu0 0.0
        %1060 = vmatpush1.msra.mxu0 0.0
        %1061 = vmatprep.subr.mxu0 0.0
        %1062 = vmatpush1.msra.mxu0 0.0
        %1063 = vmatprep.subr.mxu0 0.0
        %1064 = vmatpush1.msra.mxu0 0.0
        %1065 = vmatprep.subr.mxu0 0.0
        %1066 = vmatpush1.msra.mxu0 0.0
        %1067 = vmatprep.subr.mxu0 0.0
        %1068 = vmatpush1.msra.mxu0 0.0
        %1069 = vmatprep.subr.mxu0 0.0
        %1070 = vmatpush1.msra.mxu0 0.0
        %1071 = vmatprep.subr.mxu0 0.0
        %1072 = vmatpush1.msra.mxu0 0.0
        %1073 = vmatprep.subr.mxu0 0.0
        %1074 = vmatpush1.msra.mxu0 0.0
        %1075 = vmatprep.subr.mxu0 0.0
        %1076 = vmatpush1.msra.mxu0 0.0
        %1077 = vmatprep.subr.mxu0 0.0
        %1078 = vmatpush1.msra.mxu0 0.0
        %1079 = vmatprep.mubr.f32.mxu0 0.0
        %1080 = vmatmul.mubr.f32.gmra.mrb[0].mxu0 %v1013
        %v1081 = vpop.f32.mrb[0].mxu0
        %v1082 = vadd.f32 %v1010, %v1081
        %v1083 = vpop.f32.mrb[0].mxu0
        %v1084 = vadd.f32 %v1010, %v1083
        %1085 = vdwg.mxu0
        %1086 = vmatprep.subr.mxu0 %v999
        %1087 = vmatpush1.msra.mxu0 %v998
        %1088 = vmatprep.subr.mxu0 0.0
        %1089 = vmatpush1.msra.mxu0 0.0
        %1090 = vmatprep.subr.mxu0 0.0
        %1091 = vmatpush1.msra.mxu0 0.0
        %1092 = vmatprep.subr.mxu0 0.0
        %1093 = vmatpush1.msra.mxu0 0.0
        %1094 = vmatprep.subr.mxu0 0.0
        %1095 = vmatpush1.msra.mxu0 0.0
        %1096 = vmatprep.subr.mxu0 0.0
        %1097 = vmatpush1.msra.mxu0 0.0
        %1098 = vmatprep.subr.mxu0 0.0
        %1099 = vmatpush1.msra.mxu0 0.0
        %1100 = vmatprep.subr.mxu0 0.0
        %1101 = vmatpush1.msra.mxu0 0.0
        %1102 = vmatprep.subr.mxu0 0.0
        %1103 = vmatpush1.msra.mxu0 0.0
        %1104 = vmatprep.subr.mxu0 0.0
        %1105 = vmatpush1.msra.mxu0 0.0
        %1106 = vmatprep.subr.mxu0 0.0
        %1107 = vmatpush1.msra.mxu0 0.0
        %1108 = vmatprep.subr.mxu0 0.0
        %1109 = vmatpush1.msra.mxu0 0.0
        %1110 = vmatprep.subr.mxu0 0.0
        %1111 = vmatpush1.msra.mxu0 0.0
        %1112 = vmatprep.subr.mxu0 0.0
        %1113 = vmatpush1.msra.mxu0 0.0
        %1114 = vmatprep.subr.mxu0 0.0
        %1115 = vmatpush1.msra.mxu0 0.0
        %1116 = vmatprep.subr.mxu0 0.0
        %1117 = vmatpush1.msra.mxu0 0.0
        %1118 = vmatprep.subr.mxu0 0.0
        %1119 = vmatpush1.msra.mxu0 0.0
        %1120 = vmatprep.subr.mxu0 0.0
        %1121 = vmatpush1.msra.mxu0 0.0
        %1122 = vmatprep.subr.mxu0 0.0
        %1123 = vmatpush1.msra.mxu0 0.0
        %1124 = vmatprep.subr.mxu0 0.0
        %1125 = vmatpush1.msra.mxu0 0.0
        %1126 = vmatprep.subr.mxu0 0.0
        %1127 = vmatpush1.msra.mxu0 0.0
        %1128 = vmatprep.subr.mxu0 0.0
        %1129 = vmatpush1.msra.mxu0 0.0
        %1130 = vmatprep.subr.mxu0 0.0
        %1131 = vmatpush1.msra.mxu0 0.0
        %1132 = vmatprep.subr.mxu0 0.0
        %1133 = vmatpush1.msra.mxu0 0.0
        %1134 = vmatprep.subr.mxu0 0.0
        %1135 = vmatpush1.msra.mxu0 0.0
        %1136 = vmatprep.subr.mxu0 0.0
        %1137 = vmatpush1.msra.mxu0 0.0
        %1138 = vmatprep.subr.mxu0 0.0
        %1139 = vmatpush1.msra.mxu0 0.0
        %1140 = vmatprep.subr.mxu0 0.0
        %1141 = vmatpush1.msra.mxu0 0.0
        %1142 = vmatprep.subr.mxu0 0.0
        %1143 = vmatpush1.msra.mxu0 0.0
        %1144 = vmatprep.subr.mxu0 0.0
        %1145 = vmatpush1.msra.mxu0 0.0
        %1146 = vmatprep.subr.mxu0 0.0
        %1147 = vmatpush1.msra.mxu0 0.0
        %1148 = vmatprep.subr.mxu0 0.0
        %1149 = vmatpush1.msra.mxu0 0.0
        %1150 = vmatprep.mubr.f32.mxu0 0.0
        %1151 = vmatmul.mubr.f32.gmra.mrb[0].mxu0 %v1013
        %v1152 = vpop.f32.mrb[0].mxu0
        %v1153 = vadd.f32 %v1010, %v1152
        %v1154 = vpop.f32.mrb[0].mxu0
        %v1155 = vadd.f32 %v1010, %v1154
        %1156 = vdwg.mxu0
        %v1157 = vxor.u32 %v1082, 2147483648
        %v1158 = vxor.u32 %v1084, 2147483648
        %v1159 = vxor.u32 %v1153, 2147483648
        %v1160 = vxor.u32 %v1155, 2147483648
        %v1161 = vmul.f32 %v1157, 1.442695
        %v1162 = vpow.pop %v1161
        %v1163 = vmul.f32 %v1158, 1.442695
        %v1164 = vpow.pop %v1163
        %v1165 = vmul.f32 %v1159, 1.442695
        %v1166 = vpow.pop %v1165
        %v1167 = vmul.f32 %v1160, 1.442695
        %v1168 = vpow.pop %v1167
        %v1169 = vadd.f32 %v1162, 1.0
        %v1170 = vadd.f32 %v1164, 1.0
        %v1171 = vadd.f32 %v1166, 1.0
        %v1172 = vadd.f32 %v1168, 1.0
        %v1173 = vrcp.pop %v1169
        %v1174 = vmul.f32 1.0, %v1173
        %v1175 = vrcp.pop %v1170
        %v1176 = vmul.f32 1.0, %v1175
        %v1177 = vrcp.pop %v1171
        %v1178 = vmul.f32 1.0, %v1177
        %v1179 = vrcp.pop %v1172
        %v1180 = vmul.f32 1.0, %v1179
        %v1185 = vcombine.low %v1174, %v1176
        %v1186 = vcombine.low %v1178, %v1180
        %v1188 = vunpack.c.l.s4 1966171168
        %v1189 = vunpack.c.0.s8 %v1188
        %v1190 = vlaneseq
        %v1191 = vshrl.u32 %v1190, 7
        %v1192 = vsub.s32 %v1189, %v1191
        %v1193 = vrot.slane %v1185, %v1192
        %v1195 = vunpack.c.l.s4 1966171168
        %v1196 = vunpack.c.0.s8 %v1195
        %v1197 = vlaneseq
        %v1198 = vshrl.u32 %v1197, 7
        %v1199 = vsub.s32 %v1196, %v1198
        %v1200 = vrot.slane %v1186, %v1199
        %v1201 = vcombine.low %v1193, %v1200
        %v1203 = vunpack.c.l.s4 1966171168
        %v1204 = vunpack.c.0.s8 %v1203
        %v1205 = vlaneseq
        %v1206 = vshrl.u32 %v1205, 7
        %v1207 = vsub.s32 %v1204, %v1206
        %v1208 = vrot.slane %v1201, %v1207
        %v1210 = vlaneseq
        %vm1211 = vcmp.ge.s32.totalorder %v1210, 0
        %vm1212 = vcmp.lt.s32.totalorder %v1210, 512
        %vm1213 = vmand %vm1211, %vm1212
        %1214 = vst.msk [vmem:[%s339] sm:$0xf] %vm1213, %v1208
        %s1215 = sand.u32 %s213, 1
        %s1216 = scalar_lea.sflag [#allocation5], %s1215
        %s1217 = sand.u32 %s213, 1
        %s1218 = smul.addr %s1217, 4
        %s1219 = scalar_lea.vmem [#allocation6], %s1218
        // Predicated region
        $region57: #{tpu_custom_call.1} parent=51 // pred_check
          %p1220 = pneg %p223
        $region58: #{tpu_custom_call.1} parent=51 // pred_check_branch
          %1222 = sbr.rel (%p1220) target = $region60
        $region59: #{tpu_custom_call.1} parent=51 // pred_region
          %s1223 = smul.u32 4, %s27
          %s1225 = ssub.s32 64, 64
          %1226 = vsyncadd %s1216, %s1225
          %s1227 = smul.addr %s1223, 16
          %s1228 = scalar_lea.hbm %s8, %s1227
          %s1230 = sshll.u32 %s1219, 4
          %s1231 = int_to_ptr.vmem [resolvable:$true] %s1230
          %1233 = dma.vmem_to_hbm [thread:$0]  %s1231, 64, %s1228, %s1216
        $region60: #{tpu_custom_call.1} parent=51 // pred_fallthru
          _
      $region52: #{tpu_custom_call.1} parent=5 // pred_fallthru
        _
      %p1234 = scmp.le.s32.totalorder 2, %s22
      // Predicated region
      $region61: #{tpu_custom_call.1} parent=5 // pred_check
        %p1235 = pneg %p1234
      $region62: #{tpu_custom_call.1} parent=5 // pred_check_branch
        %1237 = sbr.rel (%p1235) target = $region64
      $region63: #{tpu_custom_call.1} parent=5 // pred_region
        %s1238 = ssub.s32 %s22, 2
        // Predicated region
        $region65: #{tpu_custom_call.1} parent=63 // pred_check
          %p1239 = pneg %p229
        $region66: #{tpu_custom_call.1} parent=63 // pred_check_branch
          %1241 = sbr.rel (%p1239) target = $region68
        $region67: #{tpu_custom_call.1} parent=63 // pred_region
          %s1242 = sand.u32 %s214, 1
          %s1243 = scalar_lea.sflag [#allocation5], %s1242
          %s1244 = sand.u32 %s214, 1
          %s1245 = smul.addr %s1244, 4
          %s1246 = scalar_lea.vmem [#allocation6], %s1245
          %1247 = dma.done %s1243, 64
        $region68: #{tpu_custom_call.1} parent=63 // pred_fallthru
          _
      $region64: #{tpu_custom_call.1} parent=5 // pred_fallthru
        _
    $region6: #{tpu_custom_call.1} parent=1 // loop_footer
      %s26 = sadd.s32 1, %s22
    $region7: #{tpu_custom_call.1} parent=1 // loop_footer_branch
      %21 = sbr.rel target = $region3
    $region8: #{tpu_custom_call.1} parent=1 // loop_exit
      _
    %1248 = vsyncpa [#allocation4], 1
    %s1249 = scalar_lea.sflag [#allocation4], 1
    %1250 = vsyncpa %s1249, 1
    %1251 = vsyncpa [#allocation5], 1
    %s1252 = scalar_lea.sflag [#allocation5], 1
    %1253 = vsyncpa %s1252, 1

</llo_original>
